<compile_context>
chip_gen: v7x
topology: tpu7x:2x2x1
jax: 0.10.0
libtpu: 0.0.40
codegen_flags: <defaults>
</compile_context>

<pallas_src>
import functools
import math

import jax
import jax.numpy as jnp
from jax.experimental import pallas as pl
from jax.experimental.pallas import tpu as pltpu


def _rbf_kernel(d_ref, sel_ref, c_ref, nw_ref, o_ref, *, cutoff, pack):
    # d_ref:   (TR, pack)      packed distances (pack output-row groups per row)
    # sel_ref: (pack, lane_w)  constant 0/1 selector, sel[p, l] = (l // R == p)
    # c_ref:   (1, lane_w)     centers tiled pack times along lanes
    # nw_ref:  (1, lane_w)     -widths tiled pack times along lanes
    # o_ref:   (TR, lane_w)    lane-dense output block
    rows = d_ref.shape[0]
    lane_w = c_ref.shape[1]

    if pack > 1:
        # Lane expansion on the idle MXU: dd[r, l] = d_ref[r, l // R].
        # HIGHEST precision makes the 0/1 matmul bit-exact in f32 (exactly one
        # nonzero term per output lane).
        dd = jnp.dot(d_ref[...], sel_ref[...],
                     preferred_element_type=jnp.float32,
                     precision=jax.lax.Precision.HIGHEST)
    else:
        dd = jnp.broadcast_to(d_ref[:, 0:1], (rows, lane_w))

    diff = dd - c_ref[...]                          # (TR, lane_w)
    rbf = jnp.exp((diff * diff) * nw_ref[...])      # exp(-w * (d - c)^2)
    # NOTE: for a ragged last grid block the out-of-bounds distance rows hold
    # stale VMEM garbage; exp() of that garbage may be inf/NaN, which is
    # harmless only because Pallas masks those rows at writeback.  Keep this
    # invariant if this ever moves to pl.ANY + manual DMA.
    o_ref[...] = jnp.where(dd <= cutoff, rbf, 0.0).astype(o_ref.dtype)


def radial_basis_function(distances: jax.Array,
                          centers: jax.Array,
                          widths: jax.Array,
                          cutoff: float,
                          *,
                          tile_rows: int | None = None,
                          out_dtype=jnp.float32) -> jax.Array:
    """Pallas equivalent of RadialBasisFunction.forward.

    distances: arbitrary shape [N, ...], float
    returns:   [N, ..., num_radial] in `out_dtype`

    Pass out_dtype=jnp.bfloat16 to halve HBM writeback (the kernel is
    writeback-bound on v5e/v6e); default float32 matches the PyTorch module.
    """
    num_radial = int(centers.shape[0])
    orig_shape = distances.shape
    m = 1
    for s in orig_shape:
        m *= int(s)

    # Pack so that the output lane width is always a multiple of 128.
    pack = math.lcm(num_radial, 128) // num_radial
    lane_w = pack * num_radial
    out_itemsize = jnp.dtype(out_dtype).itemsize

    # Flatten distances; pad the (tiny) input with a sentinel > cutoff so the
    # padded tail evaluates to exactly 0 and can be sliced off afterwards.
    d_flat = distances.reshape(m).astype(jnp.float32)
    pad_n = (-m) % pack
    if pad_n:
        d_flat = jnp.concatenate(
            [d_flat, jnp.full((pad_n,), float(cutoff) + 1.0, jnp.float32)])
    rows_total = (m + pad_n) // pack
    d2 = d_flat.reshape(rows_total, pack)

    # Constant operands (tiny).
    c2 = jnp.tile(centers.astype(jnp.float32), pack).reshape(1, lane_w)
    nw2 = jnp.tile(-widths.astype(jnp.float32), pack).reshape(1, lane_w)
    lane_grp = jnp.arange(lane_w, dtype=jnp.int32) // num_radial
    sel = (lane_grp[None, :] ==
           jnp.arange(pack, dtype=jnp.int32)[:, None]).astype(jnp.float32)

    # --- tile-size heuristic -------------------------------------------------
    # VMEM per output row (double-buffered): output block + the distance block,
    # which is lane-PADDED to 128 in VMEM (tile_rows*128*4 B per buffer no
    # matter how small `pack` is) -- budget it explicitly.
    auto = tile_rows is None
    if auto:
        bytes_per_row = 2 * lane_w * out_itemsize + 2 * 128 * 4
        tile_rows = ((12 << 20) // bytes_per_row // 8) * 8   # ~3 MiB f32 out blocks
        if rows_total >= 32:
            # Keep >= 4 grid steps: feeds both TensorCores on v7x and keeps the
            # DMA/compute double-buffering pipeline busy.
            tile_rows = min(tile_rows, (rows_total // 4 // 8) * 8)
        tile_rows = max(8, tile_rows)
    else:
        tile_rows = max(8, (int(tile_rows) // 8) * 8)
    tile_rows = min(tile_rows, rows_total)   # full-extent block is always legal

    grid = (pl.cdiv(rows_total, tile_rows),)

    # Explicit VMEM budget (v5e scoped default is only 16 MiB; set the limit
    # from the real footprint instead of relying on defaults).
    sel_rows_pad = ((pack + 7) // 8) * 8
    vmem_bytes = (2 * tile_rows * lane_w * out_itemsize   # output, double-buffered
                  + 2 * tile_rows * 128 * 4               # lane-padded distance block
                  + 2 * 2 * 8 * lane_w * 4                # centers + (-widths)
                  + 2 * sel_rows_pad * lane_w * 4)        # selector
    vmem_limit = int(min(vmem_bytes + (4 << 20), 48 << 20))

    n_out = rows_total * lane_w
    cost = pl.CostEstimate(
        flops=7 * n_out + (2 * pack * n_out if pack > 1 else 0),
        transcendentals=n_out,
        bytes_accessed=(rows_total * pack * 4
                        + (2 + sel_rows_pad) * lane_w * 4
                        + n_out * out_itemsize),
    )

    out = pl.pallas_call(
        functools.partial(_rbf_kernel, cutoff=float(cutoff), pack=pack),
        out_shape=jax.ShapeDtypeStruct((rows_total, lane_w), out_dtype),
        grid_spec=pltpu.PrefetchScalarGridSpec(
            num_scalar_prefetch=0,
            grid=grid,
            in_specs=[
                pl.BlockSpec((tile_rows, pack), lambda i: (i, 0)),
                pl.BlockSpec((pack, lane_w), lambda i: (0, 0)),
                pl.BlockSpec((1, lane_w), lambda i: (0, 0)),
                pl.BlockSpec((1, lane_w), lambda i: (0, 0)),
            ],
            out_specs=pl.BlockSpec((tile_rows, lane_w), lambda i: (i, 0)),
        ),
        compiler_params=pltpu.CompilerParams(
            dimension_semantics=("parallel",),
            vmem_limit_bytes=vmem_limit),
        cost_estimate=cost,
    )(d2, sel, c2, nw2)

    # (rows_total, pack*num_radial) row-major == (rows_total*pack, num_radial)
    # row-major -> free reshape; slice only if the input was sentinel-padded.
    out_flat = out.reshape(rows_total * pack, num_radial)
    if pad_n:
        out_flat = out_flat[:m]
    return out_flat.reshape(*orig_shape, num_radial)


if __name__ == "__main__":
    cutoff = 10.0
    key = jax.random.PRNGKey(0)
    k1, k2, k3 = jax.random.split(key, 3)

    def make_params(num_radial):
        c = jnp.linspace(0.0, cutoff, num_radial).astype(jnp.float32)
        w = jnp.ones((num_radial,), jnp.float32) * 0.5
        return c, w

    def reference(d, c, w):
        dd = d[..., None]
        r = jnp.exp(-w * (dd - c) ** 2)
        return r * (dd <= cutoff).astype(jnp.float32)

    # 1) num_radial=64 (pack=2, 128-lane output), m divisible by pack.
    c64, w64 = make_params(64)
    d1 = jax.random.uniform(k1, (2, 8), jnp.float32, 0.0, 12.0)  # some > cutoff
    out1 = jax.block_until_ready(radial_basis_function(d1, c64, w64, cutoff))
    assert out1.shape == (2, 8, 64)
    assert jnp.allclose(out1, reference(d1, c64, w64), atol=1e-5, rtol=1e-5)

    # 2) Ragged element count (m=15, pack=2): sentinel-padded input path.
    d2 = jax.random.uniform(k2, (3, 5), jnp.float32, 0.0, 12.0)
    out2 = jax.block_until_ready(radial_basis_function(d2, c64, w64, cutoff))
    assert out2.shape == (3, 5, 64)
    assert jnp.allclose(out2, reference(d2, c64, w64), atol=1e-5, rtol=1e-5)

    # 3) num_radial=48 (pack = lcm(48,128)//48 = 8): generalized pack rule.
    c48, w48 = make_params(48)
    d3 = jax.random.uniform(k3, (4, 16), jnp.float32, 0.0, 12.0)
    out3 = jax.block_until_ready(radial_basis_function(d3, c48, w48, cutoff))
    assert out3.shape == (4, 16, 48)
    assert jnp.allclose(out3, reference(d3, c48, w48), atol=1e-5, rtol=1e-5)

    # 4) bf16 writeback path (halves HBM writeback on v5e/v6e).
    out4 = jax.block_until_ready(
        radial_basis_function(d1, c64, w64, cutoff, out_dtype=jnp.bfloat16))
    assert out4.dtype == jnp.bfloat16
    assert jnp.allclose(out4.astype(jnp.float32), reference(d1, c64, w64),
                        atol=2e-2, rtol=2e-2)

    print("KERNEL_OK")
</pallas_src>

<mosaic_0001>
module attributes {stable_mosaic.version = 11 : i64} {
  func.func @_rbf_kernel(%arg0: i32, %arg1: memref<8x2xf32, #tpu.memory_space<vmem>>, %arg2: memref<2x128xf32, #tpu.memory_space<vmem>>, %arg3: memref<1x128xf32, #tpu.memory_space<vmem>>, %arg4: memref<1x128xf32, #tpu.memory_space<vmem>>, %arg5: memref<8x128xf32, #tpu.memory_space<vmem>>) attributes {dimension_semantics = [#tpu.dimension_semantics<parallel>], iteration_bounds = array<i64: 1>, scalar_prefetch = 0 : i64, scratch_operands = 0 : i64, tpu.core_type = #tpu.core_type<tc>, window_params = [{transform_indices = @transform_0, window_bounds = array<i64: 8, 2>}, {pipeline_mode = #tpu.pipeline_mode<synchronous>, transform_indices = @transform_1, window_bounds = array<i64: 2, 128>}, {pipeline_mode = #tpu.pipeline_mode<synchronous>, transform_indices = @transform_2, window_bounds = array<i64: 1, 128>}, {pipeline_mode = #tpu.pipeline_mode<synchronous>, transform_indices = @transform_3, window_bounds = array<i64: 1, 128>}, {transform_indices = @transform_4, window_bounds = array<i64: 8, 128>}]} {
    %c0 = arith.constant 0 : index
    %c0_0 = arith.constant 0 : index
    %0 = vector.load %arg1[%c0, %c0_0] : memref<8x2xf32, #tpu.memory_space<vmem>>, vector<8x2xf32>
    %c0_1 = arith.constant 0 : index
    %c0_2 = arith.constant 0 : index
    %1 = vector.load %arg2[%c0_1, %c0_2] : memref<2x128xf32, #tpu.memory_space<vmem>>, vector<2x128xf32>
    %cst = arith.constant dense<0.000000e+00> : vector<8x128xf32>
    %2 = tpu.matmul %0, %1, %cst {dimension_numbers = #tpu.dot_dimension_numbers<[1], [0], [0], [1], [0, 0, 1, 1], [], []>, precision = #tpu.contract_precision<fp32>} : vector<8x2xf32>, vector<2x128xf32>, vector<8x128xf32> -> vector<8x128xf32>
    %c0_3 = arith.constant 0 : index
    %c0_4 = arith.constant 0 : index
    %3 = vector.load %arg3[%c0_3, %c0_4] : memref<1x128xf32, #tpu.memory_space<vmem>>, vector<1x128xf32>
    %4 = vector.broadcast %3 : vector<1x128xf32> to vector<8x128xf32>
    %5 = arith.subf %2, %4 : vector<8x128xf32>
    %6 = arith.mulf %5, %5 : vector<8x128xf32>
    %c0_5 = arith.constant 0 : index
    %c0_6 = arith.constant 0 : index
    %7 = vector.load %arg4[%c0_5, %c0_6] : memref<1x128xf32, #tpu.memory_space<vmem>>, vector<1x128xf32>
    %8 = vector.broadcast %7 : vector<1x128xf32> to vector<8x128xf32>
    %9 = arith.mulf %6, %8 : vector<8x128xf32>
    %10 = math.exp %9 : vector<8x128xf32>
    %cst_7 = arith.constant 1.000000e+01 : f32
    %11 = vector.broadcast %cst_7 : f32 to vector<8x128xf32>
    %12 = arith.cmpf ole, %2, %11 : vector<8x128xf32>
    %cst_8 = arith.constant 0.000000e+00 : f32
    %13 = vector.broadcast %cst_8 : f32 to vector<8x128xf32>
    %14 = arith.select %12, %10, %13 : vector<8x128xi1>, vector<8x128xf32>
    %c0_9 = arith.constant 0 : index
    %c0_10 = arith.constant 0 : index
    %15 = vector.load %arg5[%c0_9, %c0_10] : memref<8x128xf32, #tpu.memory_space<vmem>>, vector<8x128xf32>
    tpu.vector_store %arg5[%c0_9, %c0_10], %14 {strides = array<i32>} : memref<8x128xf32, #tpu.memory_space<vmem>>, vector<8x128xf32>,
    return
  }
  func.func @transform_0(%arg0: i32) -> (i32, i32) {
    %c0_i32 = arith.constant 0 : i32
    %c0_i32_0 = arith.constant 0 : i32
    return %arg0, %c0_i32 : i32, i32
  }
  func.func @transform_1(%arg0: i32) -> (i32, i32) {
    %c0_i32 = arith.constant 0 : i32
    %c0_i32_0 = arith.constant 0 : i32
    %c0_i32_1 = arith.constant 0 : i32
    return %c0_i32, %c0_i32_0 : i32, i32
  }
  func.func @transform_2(%arg0: i32) -> (i32, i32) {
    %c0_i32 = arith.constant 0 : i32
    %c0_i32_0 = arith.constant 0 : i32
    %c0_i32_1 = arith.constant 0 : i32
    return %c0_i32, %c0_i32_0 : i32, i32
  }
  func.func @transform_3(%arg0: i32) -> (i32, i32) {
    %c0_i32 = arith.constant 0 : i32
    %c0_i32_0 = arith.constant 0 : i32
    %c0_i32_1 = arith.constant 0 : i32
    return %c0_i32, %c0_i32_0 : i32, i32
  }
  func.func @transform_4(%arg0: i32) -> (i32, i32) {
    %c0_i32 = arith.constant 0 : i32
    %c0_i32_0 = arith.constant 0 : i32
    return %arg0, %c0_i32 : i32, i32
  }
}

</mosaic_0001>

<llo_original>
// kernel: tpu_custom_call.1
$region0: #{tpu_custom_call.1}
  #allocation0 [shape = 'u32[]', space=smem, size = 0x4, offset = 0x4, fixed_abs, tag = 'smem constant byte address 0x4 - core index']
  #allocation1 [shape = 'u32[144,128]{1,0:T(1,128)}', space=vmem, size = 0x12000, scoped, tag = 'internal scratch']
  %s0 = inlined_call_operand.vmem [shape: f32[8,2], index: 0, kind: input, shape index: {}]
  %s1 = inlined_call_operand.vmem [shape: f32[2,128], index: 1, kind: input, shape index: {}]
  %s2 = inlined_call_operand.vmem [shape: f32[1,128], index: 2, kind: input, shape index: {}]
  %s3 = inlined_call_operand.vmem [shape: f32[1,128], index: 3, kind: input, shape index: {}]
  %s4 = inlined_call_operand.hbm [shape: f32[8,128], index: 4, kind: output, shape index: {}]
  %s5 = sld [smem:[#allocation0]]
  $region26: #{tpu_custom_call.1} parent=0
    _
  %s7 = ssub.s32 1, %s5
  %s8 = scalar_select 0, %s7, %s5
  $region1: #{tpu_custom_call.1} parent=0
    #allocation2 [shape = 'u8[4096]{0}', space=vmem, size = 0x1000, scoped, tag = 'output window, operand 0, single buffered']
    #allocation3 [shape = 's32[1]{0}', space=sflag, size = 0x4, scoped, tag = 'scoped memory for tpu_custom_call.1']
    %9 = vsyncpa [#allocation3], 0
    // Predicated region
    $region2: #{tpu_custom_call.1} parent=1 // pred_check
      _
    $region3: #{tpu_custom_call.1} parent=1 // pred_check_branch
      %11 = sbr.rel (0) target = $region5
    $region4: #{tpu_custom_call.1} parent=1 // pred_region
      _
    $region5: #{tpu_custom_call.1} parent=1 // pred_fallthru
      _
    // Predicated region
    $region6: #{tpu_custom_call.1} parent=1 // pred_check
      _
    $region7: #{tpu_custom_call.1} parent=1 // pred_check_branch
      %13 = sbr.rel (0) target = $region9
    $region8: #{tpu_custom_call.1} parent=1 // pred_region
      _
    $region9: #{tpu_custom_call.1} parent=1 // pred_fallthru
      _
    // Predicated region
    $region10: #{tpu_custom_call.1} parent=1 // pred_check
      _
    $region11: #{tpu_custom_call.1} parent=1 // pred_check_branch
      %15 = sbr.rel (0) target = $region13
    $region12: #{tpu_custom_call.1} parent=1 // pred_region
      _
    $region13: #{tpu_custom_call.1} parent=1 // pred_fallthru
      _
    // Predicated region
    $region14: #{tpu_custom_call.1} parent=1 // pred_check
      _
    $region15: #{tpu_custom_call.1} parent=1 // pred_check_branch
      %17 = sbr.rel (0) target = $region17
    $region16: #{tpu_custom_call.1} parent=1 // pred_region
      _
    $region17: #{tpu_custom_call.1} parent=1 // pred_fallthru
      _
    %v18 = vld [vmem:[%s0] sm:$0xff]
    %v19 = vld [vmem:[%s1] sm:$0x3]
    %vm20 = vcmask 15360
    %v22 = vsel %vm20, %v18, 0
    %vm24 = vcmask 1041408
    %v26 = vsel %vm24, %v19, 0
    %28 = vmatprep.subr.mxu0 0.0
    %v29 = vand.u32 %v26, 4294901760
    %30 = vmatpush1.msra.mxu0 %v29
    %31 = vmatprep.subr.mxu0 0.0
    %32 = vmatpush1.msra.mxu0 0.0
    %33 = vmatprep.subr.mxu0 0.0
    %34 = vmatpush1.msra.mxu0 0.0
    %35 = vmatprep.subr.mxu0 0.0
    %36 = vmatpush1.msra.mxu0 0.0
    %37 = vmatprep.subr.mxu0 0.0
    %38 = vmatpush1.msra.mxu0 0.0
    %39 = vmatprep.subr.mxu0 0.0
    %40 = vmatpush1.msra.mxu0 0.0
    %41 = vmatprep.subr.mxu0 0.0
    %42 = vmatpush1.msra.mxu0 0.0
    %43 = vmatprep.subr.mxu0 0.0
    %44 = vmatpush1.msra.mxu0 0.0
    %45 = vmatprep.subr.mxu0 0.0
    %46 = vmatpush1.msra.mxu0 0.0
    %47 = vmatprep.subr.mxu0 0.0
    %48 = vmatpush1.msra.mxu0 0.0
    %49 = vmatprep.subr.mxu0 0.0
    %50 = vmatpush1.msra.mxu0 0.0
    %51 = vmatprep.subr.mxu0 0.0
    %52 = vmatpush1.msra.mxu0 0.0
    %53 = vmatprep.subr.mxu0 0.0
    %54 = vmatpush1.msra.mxu0 0.0
    %55 = vmatprep.subr.mxu0 0.0
    %56 = vmatpush1.msra.mxu0 0.0
    %57 = vmatprep.subr.mxu0 0.0
    %58 = vmatpush1.msra.mxu0 0.0
    %59 = vmatprep.subr.mxu0 0.0
    %60 = vmatpush1.msra.mxu0 0.0
    %61 = vmatprep.subr.mxu0 0.0
    %62 = vmatpush1.msra.mxu0 0.0
    %63 = vmatprep.subr.mxu0 0.0
    %64 = vmatpush1.msra.mxu0 0.0
    %65 = vmatprep.subr.mxu0 0.0
    %66 = vmatpush1.msra.mxu0 0.0
    %67 = vmatprep.subr.mxu0 0.0
    %68 = vmatpush1.msra.mxu0 0.0
    %69 = vmatprep.subr.mxu0 0.0
    %70 = vmatpush1.msra.mxu0 0.0
    %71 = vmatprep.subr.mxu0 0.0
    %72 = vmatpush1.msra.mxu0 0.0
    %73 = vmatprep.subr.mxu0 0.0
    %74 = vmatpush1.msra.mxu0 0.0
    %75 = vmatprep.subr.mxu0 0.0
    %76 = vmatpush1.msra.mxu0 0.0
    %77 = vmatprep.subr.mxu0 0.0
    %78 = vmatpush1.msra.mxu0 0.0
    %79 = vmatprep.subr.mxu0 0.0
    %80 = vmatpush1.msra.mxu0 0.0
    %81 = vmatprep.subr.mxu0 0.0
    %82 = vmatpush1.msra.mxu0 0.0
    %83 = vmatprep.subr.mxu0 0.0
    %84 = vmatpush1.msra.mxu0 0.0
    %85 = vmatprep.subr.mxu0 0.0
    %86 = vmatpush1.msra.mxu0 0.0
    %87 = vmatprep.subr.mxu0 0.0
    %88 = vmatpush1.msra.mxu0 0.0
    %89 = vmatprep.subr.mxu0 0.0
    %90 = vmatpush1.msra.mxu0 0.0
    %91 = vmatprep.subr.mxu0 0.0
    %92 = vmatpush1.msra.mxu0 0.0
    %93 = vmatprep.mubr.f32.mxu0 0.0
    %v94 = vand.u32 %v22, 4294901760
    %v95 = vsub.f32 %v22, %v94
    %v96 = vand.u32 %v95, 4294901760
    %v97 = vsub.f32 %v95, %v96
    %v98 = vand.u32 %v97, 4294901760
    %99 = vmatmul.mubr.f32.gmra.mrb[0].mxu0 %v98
    %v100 = vpop.f32.mrb[0].mxu0
    %v101 = vadd.f32 0.0, %v100
    %v102 = vpop.f32.mrb[0].mxu0
    %103 = vdwg.mxu0
    %104 = vmatprep.subr.mxu0 0.0
    %v105 = vand.u32 %v26, 4294901760
    %v106 = vsub.f32 %v26, %v105
    %v107 = vand.u32 %v106, 4294901760
    %v108 = vsub.f32 %v106, %v107
    %v109 = vand.u32 %v108, 4294901760
    %110 = vmatpush1.msra.mxu0 %v109
    %111 = vmatprep.subr.mxu0 0.0
    %112 = vmatpush1.msra.mxu0 0.0
    %113 = vmatprep.subr.mxu0 0.0
    %114 = vmatpush1.msra.mxu0 0.0
    %115 = vmatprep.subr.mxu0 0.0
    %116 = vmatpush1.msra.mxu0 0.0
    %117 = vmatprep.subr.mxu0 0.0
    %118 = vmatpush1.msra.mxu0 0.0
    %119 = vmatprep.subr.mxu0 0.0
    %120 = vmatpush1.msra.mxu0 0.0
    %121 = vmatprep.subr.mxu0 0.0
    %122 = vmatpush1.msra.mxu0 0.0
    %123 = vmatprep.subr.mxu0 0.0
    %124 = vmatpush1.msra.mxu0 0.0
    %125 = vmatprep.subr.mxu0 0.0
    %126 = vmatpush1.msra.mxu0 0.0
    %127 = vmatprep.subr.mxu0 0.0
    %128 = vmatpush1.msra.mxu0 0.0
    %129 = vmatprep.subr.mxu0 0.0
    %130 = vmatpush1.msra.mxu0 0.0
    %131 = vmatprep.subr.mxu0 0.0
    %132 = vmatpush1.msra.mxu0 0.0
    %133 = vmatprep.subr.mxu0 0.0
    %134 = vmatpush1.msra.mxu0 0.0
    %135 = vmatprep.subr.mxu0 0.0
    %136 = vmatpush1.msra.mxu0 0.0
    %137 = vmatprep.subr.mxu0 0.0
    %138 = vmatpush1.msra.mxu0 0.0
    %139 = vmatprep.subr.mxu0 0.0
    %140 = vmatpush1.msra.mxu0 0.0
    %141 = vmatprep.subr.mxu0 0.0
    %142 = vmatpush1.msra.mxu0 0.0
    %143 = vmatprep.subr.mxu0 0.0
    %144 = vmatpush1.msra.mxu0 0.0
    %145 = vmatprep.subr.mxu0 0.0
    %146 = vmatpush1.msra.mxu0 0.0
    %147 = vmatprep.subr.mxu0 0.0
    %148 = vmatpush1.msra.mxu0 0.0
    %149 = vmatprep.subr.mxu0 0.0
    %150 = vmatpush1.msra.mxu0 0.0
    %151 = vmatprep.subr.mxu0 0.0
    %152 = vmatpush1.msra.mxu0 0.0
    %153 = vmatprep.subr.mxu0 0.0
    %154 = vmatpush1.msra.mxu0 0.0
    %155 = vmatprep.subr.mxu0 0.0
    %156 = vmatpush1.msra.mxu0 0.0
    %157 = vmatprep.subr.mxu0 0.0
    %158 = vmatpush1.msra.mxu0 0.0
    %159 = vmatprep.subr.mxu0 0.0
    %160 = vmatpush1.msra.mxu0 0.0
    %161 = vmatprep.subr.mxu0 0.0
    %162 = vmatpush1.msra.mxu0 0.0
    %163 = vmatprep.subr.mxu0 0.0
    %164 = vmatpush1.msra.mxu0 0.0
    %165 = vmatprep.subr.mxu0 0.0
    %166 = vmatpush1.msra.mxu0 0.0
    %167 = vmatprep.subr.mxu0 0.0
    %168 = vmatpush1.msra.mxu0 0.0
    %169 = vmatprep.subr.mxu0 0.0
    %170 = vmatpush1.msra.mxu0 0.0
    %171 = vmatprep.subr.mxu0 0.0
    %172 = vmatpush1.msra.mxu0 0.0
    %173 = vmatprep.mubr.f32.mxu0 0.0
    %v174 = vand.u32 %v22, 4294901760
    %175 = vmatmul.mubr.f32.gmra.mrb[0].mxu0 %v174
    %v176 = vpop.f32.mrb[0].mxu0
    %v177 = vadd.f32 %v101, %v176
    %v178 = vpop.f32.mrb[0].mxu0
    %179 = vdwg.mxu0
    %180 = vmatprep.subr.mxu0 0.0
    %v181 = vand.u32 %v26, 4294901760
    %v182 = vsub.f32 %v26, %v181
    %183 = vmatpush1.msra.mxu0 %v182
    %184 = vmatprep.subr.mxu0 0.0
    %185 = vmatpush1.msra.mxu0 0.0
    %186 = vmatprep.subr.mxu0 0.0
    %187 = vmatpush1.msra.mxu0 0.0
    %188 = vmatprep.subr.mxu0 0.0
    %189 = vmatpush1.msra.mxu0 0.0
    %190 = vmatprep.subr.mxu0 0.0
    %191 = vmatpush1.msra.mxu0 0.0
    %192 = vmatprep.subr.mxu0 0.0
    %193 = vmatpush1.msra.mxu0 0.0
    %194 = vmatprep.subr.mxu0 0.0
    %195 = vmatpush1.msra.mxu0 0.0
    %196 = vmatprep.subr.mxu0 0.0
    %197 = vmatpush1.msra.mxu0 0.0
    %198 = vmatprep.subr.mxu0 0.0
    %199 = vmatpush1.msra.mxu0 0.0
    %200 = vmatprep.subr.mxu0 0.0
    %201 = vmatpush1.msra.mxu0 0.0
    %202 = vmatprep.subr.mxu0 0.0
    %203 = vmatpush1.msra.mxu0 0.0
    %204 = vmatprep.subr.mxu0 0.0
    %205 = vmatpush1.msra.mxu0 0.0
    %206 = vmatprep.subr.mxu0 0.0
    %207 = vmatpush1.msra.mxu0 0.0
    %208 = vmatprep.subr.mxu0 0.0
    %209 = vmatpush1.msra.mxu0 0.0
    %210 = vmatprep.subr.mxu0 0.0
    %211 = vmatpush1.msra.mxu0 0.0
    %212 = vmatprep.subr.mxu0 0.0
    %213 = vmatpush1.msra.mxu0 0.0
    %214 = vmatprep.subr.mxu0 0.0
    %215 = vmatpush1.msra.mxu0 0.0
    %216 = vmatprep.subr.mxu0 0.0
    %217 = vmatpush1.msra.mxu0 0.0
    %218 = vmatprep.subr.mxu0 0.0
    %219 = vmatpush1.msra.mxu0 0.0
    %220 = vmatprep.subr.mxu0 0.0
    %221 = vmatpush1.msra.mxu0 0.0
    %222 = vmatprep.subr.mxu0 0.0
    %223 = vmatpush1.msra.mxu0 0.0
    %224 = vmatprep.subr.mxu0 0.0
    %225 = vmatpush1.msra.mxu0 0.0
    %226 = vmatprep.subr.mxu0 0.0
    %227 = vmatpush1.msra.mxu0 0.0
    %228 = vmatprep.subr.mxu0 0.0
    %229 = vmatpush1.msra.mxu0 0.0
    %230 = vmatprep.subr.mxu0 0.0
    %231 = vmatpush1.msra.mxu0 0.0
    %232 = vmatprep.subr.mxu0 0.0
    %233 = vmatpush1.msra.mxu0 0.0
    %234 = vmatprep.subr.mxu0 0.0
    %235 = vmatpush1.msra.mxu0 0.0
    %236 = vmatprep.subr.mxu0 0.0
    %237 = vmatpush1.msra.mxu0 0.0
    %238 = vmatprep.subr.mxu0 0.0
    %239 = vmatpush1.msra.mxu0 0.0
    %240 = vmatprep.subr.mxu0 0.0
    %241 = vmatpush1.msra.mxu0 0.0
    %242 = vmatprep.subr.mxu0 0.0
    %243 = vmatpush1.msra.mxu0 0.0
    %244 = vmatprep.subr.mxu0 0.0
    %245 = vmatpush1.msra.mxu0 0.0
    %246 = vmatprep.mubr.f32.mxu0 0.0
    %v247 = vand.u32 %v22, 4294901760
    %v248 = vsub.f32 %v22, %v247
    %249 = vmatmul.mubr.f32.gmra.mrb[0].mxu0 %v248
    %v250 = vpop.f32.mrb[0].mxu0
    %v251 = vadd.f32 %v177, %v250
    %v252 = vpop.f32.mrb[0].mxu0
    %253 = vdwg.mxu0
    %254 = vmatprep.subr.mxu0 0.0
    %v255 = vand.u32 %v26, 4294901760
    %256 = vmatpush1.msra.mxu0 %v255
    %257 = vmatprep.subr.mxu0 0.0
    %258 = vmatpush1.msra.mxu0 0.0
    %259 = vmatprep.subr.mxu0 0.0
    %260 = vmatpush1.msra.mxu0 0.0
    %261 = vmatprep.subr.mxu0 0.0
    %262 = vmatpush1.msra.mxu0 0.0
    %263 = vmatprep.subr.mxu0 0.0
    %264 = vmatpush1.msra.mxu0 0.0
    %265 = vmatprep.subr.mxu0 0.0
    %266 = vmatpush1.msra.mxu0 0.0
    %267 = vmatprep.subr.mxu0 0.0
    %268 = vmatpush1.msra.mxu0 0.0
    %269 = vmatprep.subr.mxu0 0.0
    %270 = vmatpush1.msra.mxu0 0.0
    %271 = vmatprep.subr.mxu0 0.0
    %272 = vmatpush1.msra.mxu0 0.0
    %273 = vmatprep.subr.mxu0 0.0
    %274 = vmatpush1.msra.mxu0 0.0
    %275 = vmatprep.subr.mxu0 0.0
    %276 = vmatpush1.msra.mxu0 0.0
    %277 = vmatprep.subr.mxu0 0.0
    %278 = vmatpush1.msra.mxu0 0.0
    %279 = vmatprep.subr.mxu0 0.0
    %280 = vmatpush1.msra.mxu0 0.0
    %281 = vmatprep.subr.mxu0 0.0
    %282 = vmatpush1.msra.mxu0 0.0
    %283 = vmatprep.subr.mxu0 0.0
    %284 = vmatpush1.msra.mxu0 0.0
    %285 = vmatprep.subr.mxu0 0.0
    %286 = vmatpush1.msra.mxu0 0.0
    %287 = vmatprep.subr.mxu0 0.0
    %288 = vmatpush1.msra.mxu0 0.0
    %289 = vmatprep.subr.mxu0 0.0
    %290 = vmatpush1.msra.mxu0 0.0
    %291 = vmatprep.subr.mxu0 0.0
    %292 = vmatpush1.msra.mxu0 0.0
    %293 = vmatprep.subr.mxu0 0.0
    %294 = vmatpush1.msra.mxu0 0.0
    %295 = vmatprep.subr.mxu0 0.0
    %296 = vmatpush1.msra.mxu0 0.0
    %297 = vmatprep.subr.mxu0 0.0
    %298 = vmatpush1.msra.mxu0 0.0
    %299 = vmatprep.subr.mxu0 0.0
    %300 = vmatpush1.msra.mxu0 0.0
    %301 = vmatprep.subr.mxu0 0.0
    %302 = vmatpush1.msra.mxu0 0.0
    %303 = vmatprep.subr.mxu0 0.0
    %304 = vmatpush1.msra.mxu0 0.0
    %305 = vmatprep.subr.mxu0 0.0
    %306 = vmatpush1.msra.mxu0 0.0
    %307 = vmatprep.subr.mxu0 0.0
    %308 = vmatpush1.msra.mxu0 0.0
    %309 = vmatprep.subr.mxu0 0.0
    %310 = vmatpush1.msra.mxu0 0.0
    %311 = vmatprep.subr.mxu0 0.0
    %312 = vmatpush1.msra.mxu0 0.0
    %313 = vmatprep.subr.mxu0 0.0
    %314 = vmatpush1.msra.mxu0 0.0
    %315 = vmatprep.subr.mxu0 0.0
    %316 = vmatpush1.msra.mxu0 0.0
    %317 = vmatprep.subr.mxu0 0.0
    %318 = vmatpush1.msra.mxu0 0.0
    %319 = vmatprep.mubr.f32.mxu0 0.0
    %v320 = vand.u32 %v22, 4294901760
    %v321 = vsub.f32 %v22, %v320
    %v322 = vand.u32 %v321, 4294901760
    %323 = vmatmul.mubr.f32.gmra.mrb[0].mxu0 %v322
    %v324 = vpop.f32.mrb[0].mxu0
    %v325 = vadd.f32 %v251, %v324
    %v326 = vpop.f32.mrb[0].mxu0
    %327 = vdwg.mxu0
    %328 = vmatprep.subr.mxu0 0.0
    %v329 = vand.u32 %v26, 4294901760
    %v330 = vsub.f32 %v26, %v329
    %v331 = vand.u32 %v330, 4294901760
    %332 = vmatpush1.msra.mxu0 %v331
    %333 = vmatprep.subr.mxu0 0.0
    %334 = vmatpush1.msra.mxu0 0.0
    %335 = vmatprep.subr.mxu0 0.0
    %336 = vmatpush1.msra.mxu0 0.0
    %337 = vmatprep.subr.mxu0 0.0
    %338 = vmatpush1.msra.mxu0 0.0
    %339 = vmatprep.subr.mxu0 0.0
    %340 = vmatpush1.msra.mxu0 0.0
    %341 = vmatprep.subr.mxu0 0.0
    %342 = vmatpush1.msra.mxu0 0.0
    %343 = vmatprep.subr.mxu0 0.0
    %344 = vmatpush1.msra.mxu0 0.0
    %345 = vmatprep.subr.mxu0 0.0
    %346 = vmatpush1.msra.mxu0 0.0
    %347 = vmatprep.subr.mxu0 0.0
    %348 = vmatpush1.msra.mxu0 0.0
    %349 = vmatprep.subr.mxu0 0.0
    %350 = vmatpush1.msra.mxu0 0.0
    %351 = vmatprep.subr.mxu0 0.0
    %352 = vmatpush1.msra.mxu0 0.0
    %353 = vmatprep.subr.mxu0 0.0
    %354 = vmatpush1.msra.mxu0 0.0
    %355 = vmatprep.subr.mxu0 0.0
    %356 = vmatpush1.msra.mxu0 0.0
    %357 = vmatprep.subr.mxu0 0.0
    %358 = vmatpush1.msra.mxu0 0.0
    %359 = vmatprep.subr.mxu0 0.0
    %360 = vmatpush1.msra.mxu0 0.0
    %361 = vmatprep.subr.mxu0 0.0
    %362 = vmatpush1.msra.mxu0 0.0
    %363 = vmatprep.subr.mxu0 0.0
    %364 = vmatpush1.msra.mxu0 0.0
    %365 = vmatprep.subr.mxu0 0.0
    %366 = vmatpush1.msra.mxu0 0.0
    %367 = vmatprep.subr.mxu0 0.0
    %368 = vmatpush1.msra.mxu0 0.0
    %369 = vmatprep.subr.mxu0 0.0
    %370 = vmatpush1.msra.mxu0 0.0
    %371 = vmatprep.subr.mxu0 0.0
    %372 = vmatpush1.msra.mxu0 0.0
    %373 = vmatprep.subr.mxu0 0.0
    %374 = vmatpush1.msra.mxu0 0.0
    %375 = vmatprep.subr.mxu0 0.0
    %376 = vmatpush1.msra.mxu0 0.0
    %377 = vmatprep.subr.mxu0 0.0
    %378 = vmatpush1.msra.mxu0 0.0
    %379 = vmatprep.subr.mxu0 0.0
    %380 = vmatpush1.msra.mxu0 0.0
    %381 = vmatprep.subr.mxu0 0.0
    %382 = vmatpush1.msra.mxu0 0.0
    %383 = vmatprep.subr.mxu0 0.0
    %384 = vmatpush1.msra.mxu0 0.0
    %385 = vmatprep.subr.mxu0 0.0
    %386 = vmatpush1.msra.mxu0 0.0
    %387 = vmatprep.subr.mxu0 0.0
    %388 = vmatpush1.msra.mxu0 0.0
    %389 = vmatprep.subr.mxu0 0.0
    %390 = vmatpush1.msra.mxu0 0.0
    %391 = vmatprep.subr.mxu0 0.0
    %392 = vmatpush1.msra.mxu0 0.0
    %393 = vmatprep.subr.mxu0 0.0
    %394 = vmatpush1.msra.mxu0 0.0
    %395 = vmatprep.mubr.f32.mxu0 0.0
    %v396 = vand.u32 %v22, 4294901760
    %397 = vmatmul.mubr.f32.gmra.mrb[0].mxu0 %v396
    %v398 = vpop.f32.mrb[0].mxu0
    %v399 = vadd.f32 %v325, %v398
    %v400 = vpop.f32.mrb[0].mxu0
    %401 = vdwg.mxu0
    %402 = vmatprep.subr.mxu0 0.0
    %v403 = vand.u32 %v26, 4294901760
    %404 = vmatpush1.msra.mxu0 %v403
    %405 = vmatprep.subr.mxu0 0.0
    %406 = vmatpush1.msra.mxu0 0.0
    %407 = vmatprep.subr.mxu0 0.0
    %408 = vmatpush1.msra.mxu0 0.0
    %409 = vmatprep.subr.mxu0 0.0
    %410 = vmatpush1.msra.mxu0 0.0
    %411 = vmatprep.subr.mxu0 0.0
    %412 = vmatpush1.msra.mxu0 0.0
    %413 = vmatprep.subr.mxu0 0.0
    %414 = vmatpush1.msra.mxu0 0.0
    %415 = vmatprep.subr.mxu0 0.0
    %416 = vmatpush1.msra.mxu0 0.0
    %417 = vmatprep.subr.mxu0 0.0
    %418 = vmatpush1.msra.mxu0 0.0
    %419 = vmatprep.subr.mxu0 0.0
    %420 = vmatpush1.msra.mxu0 0.0
    %421 = vmatprep.subr.mxu0 0.0
    %422 = vmatpush1.msra.mxu0 0.0
    %423 = vmatprep.subr.mxu0 0.0
    %424 = vmatpush1.msra.mxu0 0.0
    %425 = vmatprep.subr.mxu0 0.0
    %426 = vmatpush1.msra.mxu0 0.0
    %427 = vmatprep.subr.mxu0 0.0
    %428 = vmatpush1.msra.mxu0 0.0
    %429 = vmatprep.subr.mxu0 0.0
    %430 = vmatpush1.msra.mxu0 0.0
    %431 = vmatprep.subr.mxu0 0.0
    %432 = vmatpush1.msra.mxu0 0.0
    %433 = vmatprep.subr.mxu0 0.0
    %434 = vmatpush1.msra.mxu0 0.0
    %435 = vmatprep.subr.mxu0 0.0
    %436 = vmatpush1.msra.mxu0 0.0
    %437 = vmatprep.subr.mxu0 0.0
    %438 = vmatpush1.msra.mxu0 0.0
    %439 = vmatprep.subr.mxu0 0.0
    %440 = vmatpush1.msra.mxu0 0.0
    %441 = vmatprep.subr.mxu0 0.0
    %442 = vmatpush1.msra.mxu0 0.0
    %443 = vmatprep.subr.mxu0 0.0
    %444 = vmatpush1.msra.mxu0 0.0
    %445 = vmatprep.subr.mxu0 0.0
    %446 = vmatpush1.msra.mxu0 0.0
    %447 = vmatprep.subr.mxu0 0.0
    %448 = vmatpush1.msra.mxu0 0.0
    %449 = vmatprep.subr.mxu0 0.0
    %450 = vmatpush1.msra.mxu0 0.0
    %451 = vmatprep.subr.mxu0 0.0
    %452 = vmatpush1.msra.mxu0 0.0
    %453 = vmatprep.subr.mxu0 0.0
    %454 = vmatpush1.msra.mxu0 0.0
    %455 = vmatprep.subr.mxu0 0.0
    %456 = vmatpush1.msra.mxu0 0.0
    %457 = vmatprep.subr.mxu0 0.0
    %458 = vmatpush1.msra.mxu0 0.0
    %459 = vmatprep.subr.mxu0 0.0
    %460 = vmatpush1.msra.mxu0 0.0
    %461 = vmatprep.subr.mxu0 0.0
    %462 = vmatpush1.msra.mxu0 0.0
    %463 = vmatprep.subr.mxu0 0.0
    %464 = vmatpush1.msra.mxu0 0.0
    %465 = vmatprep.subr.mxu0 0.0
    %466 = vmatpush1.msra.mxu0 0.0
    %467 = vmatprep.mubr.f32.mxu0 0.0
    %v468 = vand.u32 %v22, 4294901760
    %469 = vmatmul.mubr.f32.gmra.mrb[0].mxu0 %v468
    %v470 = vpop.f32.mrb[0].mxu0
    %v471 = vadd.f32 %v399, %v470
    %v472 = vpop.f32.mrb[0].mxu0
    %473 = vdwg.mxu0
    %v474 = vld [vmem:[%s2] sm:$0x1]
    %v476 = vlaneseq
    %v477 = vshrl.u32 %v476, 7
    %v478 = vsub.s32 0, %v477
    %v479 = vrot.slane %v474, %v478
    %v481 = vsub.f32 %v471, %v479
    %v482 = vmul.f32 %v481, %v481
    %v483 = vld [vmem:[%s3] sm:$0x1]
    %v485 = vlaneseq
    %v486 = vshrl.u32 %v485, 7
    %v487 = vsub.s32 0, %v486
    %v488 = vrot.slane %v483, %v487
    %v490 = vmul.f32 %v482, %v488
    %v491 = vmul.f32 %v490, 1.442695
    %v492 = vpow.pop %v491
    %vm493 = vcmp.le.f32.partialorder %v471, 10.0
    %v494 = vsel %vm493, %v492, 0.0
    %495 = vst [vmem:[#allocation2] sm:$0xff] %v494
    // Predicated region
    $region18: #{tpu_custom_call.1} parent=1 // pred_check
      _
    $region19: #{tpu_custom_call.1} parent=1 // pred_check_branch
      %497 = sbr.rel (0) target = $region21
    $region20: #{tpu_custom_call.1} parent=1 // pred_region
      %s499 = ssub.s32 128, 128
      %500 = vsyncadd [#allocation3], %s499
      %s502 = sshll.u32 [#allocation2], 4
      %s503 = int_to_ptr.vmem [resolvable:$true] %s502
      %505 = dma.vmem_to_hbm [thread:$0]  %s503, 128, %s4, [#allocation3]
    $region21: #{tpu_custom_call.1} parent=1 // pred_fallthru
      _
    // Predicated region
    $region22: #{tpu_custom_call.1} parent=1 // pred_check
      _
    $region23: #{tpu_custom_call.1} parent=1 // pred_check_branch
      %507 = sbr.rel (0) target = $region25
    $region24: #{tpu_custom_call.1} parent=1 // pred_region
      %508 = dma.done [#allocation3], 128
    $region25: #{tpu_custom_call.1} parent=1 // pred_fallthru
      _
    %509 = vsyncpa [#allocation3], 1

</llo_original>
